<compile_context>
chip_gen: v5e
topology: v5e:2x2
jax: 0.10.0
libtpu: 0.0.40
codegen_flags: <defaults>
</compile_context>

<pallas_src>
import functools

import jax
import jax.numpy as jnp
from jax.experimental import pallas as pl
from jax.experimental.pallas import tpu as pltpu

_LANES = 128
# 32 MiB scoped VMEM: above v5e's 16 MiB default, within v7x's 64 MiB physical.
_VMEM_LIMIT_BYTES = 32 * 1024 * 1024
# ~2 MiB f32 per block; x2 (in+out) x2 (double buffer) ~= 8 MiB of VMEM plus a
# few block-sized f32 temporaries -> safe on v7x, near-roofline on v5e/v6e.
_TARGET_BLOCK_ELEMS = 4096 * _LANES


def _round_up(x, m):
    return ((x + m - 1) // m) * m


def _cdiv(a, b):
    return -(-a // b)


def _sublanes_for(dtype):
    """Minimum sublane multiple for the dtype (packing along sublanes)."""
    itemsize = jnp.dtype(dtype).itemsize
    return {4: 8, 2: 16, 1: 32}.get(itemsize, 8)


def _pick_rows_tile(total_rows, row_width, sub):
    """Row tile: ~_TARGET_BLOCK_ELEMS elems, multiple of `sub`, >= ~4 grid steps."""
    target = max(sub, (_TARGET_BLOCK_ELEMS // max(row_width, 1)) // sub * sub)
    # Keep the grid a few steps long for megacore sharding / pipeline overlap.
    quarter = _round_up(_cdiv(total_rows, 4), sub)
    tile = max(sub, min(target, quarter))
    if tile >= total_rows:
        return total_rows          # single block == full dim (always a legal block)
    return tile                    # multiple of `sub`; last block masked by Pallas


# ---------------------------------------------------------------------------
# Packed path: D < 128 and 128 % D == 0  ->  k = 128 // D rows per lane-row.
# ---------------------------------------------------------------------------
def _layernorm_packed_kernel(x_ref, seg_ref, a_ref, b_ref, o_ref, *, feat_dim, eps):
    """LayerNorm over D-wide segments, k = 128 // D logical rows per lane-row.

    seg_ref is a (128, 128) block-diagonal ones matrix: (x @ seg)[r, j] is the
    sum over the D-wide segment containing lane j, i.e. the per-row sum
    broadcast to every lane of that row's segment.  Runs on the otherwise-idle
    MXU, keeping every load/store 128-lane dense.
    """
    x = x_ref[...].astype(jnp.float32)            # (T, 128)
    seg = seg_ref[...]                            # (128, 128) f32 of {0, 1}
    mean = jnp.dot(x, seg, preferred_element_type=jnp.float32) * (1.0 / feat_dim)
    diff = x - mean
    sumsq = jnp.dot(diff * diff, seg, preferred_element_type=jnp.float32)
    std = jnp.sqrt(sumsq * (1.0 / (feat_dim - 1)))         # unbiased (torch std)
    y = a_ref[...] * diff / (std + eps) + b_ref[...]       # exact divide
    o_ref[...] = y.astype(o_ref.dtype)


def _layernorm_packed(x2d, a_2, b_2, *, eps):
    r, d = x2d.shape
    pack_k = _LANES // d
    sub = _sublanes_for(x2d.dtype)

    # Only pad to a multiple of pack_k (< pack_k zero rows); zero rows are
    # harmless (block-diagonal seg keeps segments independent) and guarantee
    # that no real row shares a lane-row with undefined data.
    r_pk = _round_up(r, pack_k)
    if r_pk != r:
        x2d = jnp.pad(x2d, ((0, r_pk - r), (0, 0)))
    rows_p = r_pk // pack_k
    xp = x2d.reshape(rows_p, _LANES)              # row-major reshape: free bitcast

    rows_tile = _pick_rows_tile(rows_p, _LANES, sub)

    # Block-diagonal "segment broadcast-sum" matrix and lane-tiled params.
    lane = jnp.arange(_LANES, dtype=jnp.int32)
    seg = (lane[:, None] // d == lane[None, :] // d).astype(jnp.float32)
    a_p = jnp.tile(a_2.astype(jnp.float32).reshape(1, d), (1, pack_k))
    b_p = jnp.tile(b_2.astype(jnp.float32).reshape(1, d), (1, pack_k))

    kernel = functools.partial(_layernorm_packed_kernel, feat_dim=d, eps=eps)
    n_elems = rows_p * _LANES
    itemsize = jnp.dtype(x2d.dtype).itemsize
    cost = pl.CostEstimate(
        flops=4 * n_elems * _LANES + 8 * n_elems,   # 2 MXU passes + elementwise
        transcendentals=2 * n_elems,                # sqrt + divide
        bytes_accessed=2 * n_elems * itemsize + _LANES * _LANES * 4 + 2 * _LANES * 4,
    )
    out_p = pl.pallas_call(
        kernel,
        out_shape=jax.ShapeDtypeStruct((rows_p, _LANES), x2d.dtype),
        grid_spec=pltpu.PrefetchScalarGridSpec(
            num_scalar_prefetch=0,
            grid=(_cdiv(rows_p, rows_tile),),
            in_specs=[
                pl.BlockSpec((rows_tile, _LANES), lambda i: (i, 0)),
                pl.BlockSpec((_LANES, _LANES), lambda i: (0, 0)),
                pl.BlockSpec((1, _LANES), lambda i: (0, 0)),
                pl.BlockSpec((1, _LANES), lambda i: (0, 0)),
            ],
            out_specs=pl.BlockSpec((rows_tile, _LANES), lambda i: (i, 0)),
        ),
        compiler_params=pltpu.CompilerParams(
            dimension_semantics=("parallel",),
            vmem_limit_bytes=_VMEM_LIMIT_BYTES,
        ),
        cost_estimate=cost,
    )(xp, seg, a_p, b_p)
    out = out_p.reshape(r_pk, d)                  # free bitcast
    return out[:r] if r_pk != r else out


# ---------------------------------------------------------------------------
# General path: D >= 128 (or D does not divide 128).
# ---------------------------------------------------------------------------
def _layernorm_rows_kernel(x_ref, a_ref, b_ref, o_ref, *, feat_dim, eps):
    x = x_ref[...].astype(jnp.float32)            # (T, D)
    mean = jnp.mean(x, axis=-1, keepdims=True)
    diff = x - mean
    var = jnp.sum(diff * diff, axis=-1, keepdims=True) * (1.0 / (feat_dim - 1))
    std = jnp.sqrt(var)
    y = a_ref[...] * diff / (std + eps) + b_ref[...]       # exact divide
    o_ref[...] = y.astype(o_ref.dtype)


def _layernorm_rows(x2d, a_2, b_2, *, eps):
    r, d = x2d.shape
    sub = _sublanes_for(x2d.dtype)
    rows_tile = _pick_rows_tile(r, d, sub)
    a2 = a_2.astype(jnp.float32).reshape(1, d)
    b2 = b_2.astype(jnp.float32).reshape(1, d)

    kernel = functools.partial(_layernorm_rows_kernel, feat_dim=d, eps=eps)
    itemsize = jnp.dtype(x2d.dtype).itemsize
    cost = pl.CostEstimate(
        flops=8 * r * d,
        transcendentals=2 * r,
        bytes_accessed=2 * r * d * itemsize + 2 * d * 4,
    )
    return pl.pallas_call(
        kernel,
        out_shape=jax.ShapeDtypeStruct((r, d), x2d.dtype),
        grid_spec=pltpu.PrefetchScalarGridSpec(
            num_scalar_prefetch=0,
            grid=(_cdiv(r, rows_tile),),
            in_specs=[
                pl.BlockSpec((rows_tile, d), lambda i: (i, 0)),
                pl.BlockSpec((1, d), lambda i: (0, 0)),
                pl.BlockSpec((1, d), lambda i: (0, 0)),
            ],
            out_specs=pl.BlockSpec((rows_tile, d), lambda i: (i, 0)),
        ),
        compiler_params=pltpu.CompilerParams(
            dimension_semantics=("parallel",),
            vmem_limit_bytes=_VMEM_LIMIT_BYTES,
        ),
        cost_estimate=cost,
    )(x2d, a2, b2)


def layernorm_pallas(x2d, a_2, b_2, *, eps=1e-6):
    """x2d: (R, D); a_2, b_2: (D,).  Returns (R, D) LayerNorm (torch semantics)."""
    _, d = x2d.shape
    if 1 < d < _LANES and _LANES % d == 0:
        return _layernorm_packed(x2d, a_2, b_2, eps=eps)
    # TODO(synk): D < 128 values that do not divide 128 (e.g. 96) still take the
    # lane-masked general path; a rectangular seg matrix could keep them dense.
    return _layernorm_rows(x2d, a_2, b_2, eps=eps)


def encoder_forward(y, x, params, n_layers):
    """Encoder.forward(y, x): apply N cloned sub-layers, then LayerNorm."""
    # TODO(synk): the sub-layer class passed to Encoder(layer, N) is not defined
    # in the provided source; layers are applied as identity placeholders here.
    # Once they exist, fuse the final LayerNorm into the last layer's kernel to
    # save a full HBM round trip of x.
    for _ in range(n_layers):
        x = x  # x = layer(y, x)

    b, s, d = x.shape
    out2d = layernorm_pallas(x.reshape(b * s, d),
                             params["a_2"], params["b_2"], eps=1e-6)
    return out2d.reshape(b, s, d)


def _layernorm_ref(x, a_2, b_2, eps=1e-6):
    mean = jnp.mean(x, axis=-1, keepdims=True)
    diff = x - mean
    std = jnp.sqrt(jnp.sum(diff * diff, axis=-1, keepdims=True)
                   / (x.shape[-1] - 1))
    return a_2 * diff / (std + eps) + b_2


if __name__ == "__main__":
    # Small shapes consistent with the module: (batch, seq, features)
    B, S, D = 2, 8, 32
    N_LAYERS = 2

    key = jax.random.PRNGKey(0)
    ky, kx = jax.random.split(key)
    y = jax.random.normal(ky, (B, S, D), dtype=jnp.float32)
    x = jax.random.normal(kx, (B, S, D), dtype=jnp.float32)

    # Deterministic parameter init, exactly as in LayerNorm.__init__
    params = {
        "a_2": jnp.ones((D,), dtype=jnp.float32),
        "b_2": jnp.zeros((D,), dtype=jnp.float32),
    }

    out = jax.block_until_ready(encoder_forward(y, x, params, N_LAYERS))
    ref = _layernorm_ref(x, params["a_2"], params["b_2"])
    # Tolerance covers default-precision MXU rounding of the segment-sum matmuls.
    err = float(jnp.max(jnp.abs(out - ref)))
    assert err < 2e-2, err

    # General (D >= 128) path with a ragged row count (exercises edge masking).
    D2, R2 = 256, 15
    x2 = jax.random.normal(jax.random.PRNGKey(1), (R2, D2), dtype=jnp.float32)
    a2 = jnp.ones((D2,), jnp.float32)
    b2 = jnp.zeros((D2,), jnp.float32)
    out2 = jax.block_until_ready(layernorm_pallas(x2, a2, b2))
    ref2 = _layernorm_ref(x2, a2, b2)
    err2 = float(jnp.max(jnp.abs(out2 - ref2)))
    assert err2 < 1e-2, err2   # pure-VPU f32 path, exact divide

    # Packed path with rows not a multiple of pack_k and a ragged grid tail.
    D3, R3 = 64, 21
    x3 = jax.random.normal(jax.random.PRNGKey(2), (R3, D3), dtype=jnp.float32)
    a3 = jnp.ones((D3,), jnp.float32)
    b3 = jnp.zeros((D3,), jnp.float32)
    out3 = jax.block_until_ready(layernorm_pallas(x3, a3, b3))
    ref3 = _layernorm_ref(x3, a3, b3)
    err3 = float(jnp.max(jnp.abs(out3 - ref3)))
    assert err3 < 2e-2, err3

    print("KERNEL_OK")
</pallas_src>

<mosaic_0001>
module attributes {stable_mosaic.version = 11 : i64} {
  func.func @_layernorm_packed_kernel(%arg0: i32, %arg1: memref<4x128xf32, #tpu.memory_space<vmem>>, %arg2: memref<128x128xf32, #tpu.memory_space<vmem>>, %arg3: memref<1x128xf32, #tpu.memory_space<vmem>>, %arg4: memref<1x128xf32, #tpu.memory_space<vmem>>, %arg5: memref<4x128xf32, #tpu.memory_space<vmem>>) attributes {dimension_semantics = [#tpu.dimension_semantics<parallel>], iteration_bounds = array<i64: 1>, scalar_prefetch = 0 : i64, scratch_operands = 0 : i64, tpu.core_type = #tpu.core_type<tc>, window_params = [{transform_indices = @transform_0, window_bounds = array<i64: 4, 128>}, {pipeline_mode = #tpu.pipeline_mode<synchronous>, transform_indices = @transform_1, window_bounds = array<i64: 128, 128>}, {pipeline_mode = #tpu.pipeline_mode<synchronous>, transform_indices = @transform_2, window_bounds = array<i64: 1, 128>}, {pipeline_mode = #tpu.pipeline_mode<synchronous>, transform_indices = @transform_3, window_bounds = array<i64: 1, 128>}, {transform_indices = @transform_4, window_bounds = array<i64: 4, 128>}]} {
    %c0 = arith.constant 0 : index
    %c0_0 = arith.constant 0 : index
    %0 = vector.load %arg1[%c0, %c0_0] : memref<4x128xf32, #tpu.memory_space<vmem>>, vector<4x128xf32>
    %c0_1 = arith.constant 0 : index
    %c0_2 = arith.constant 0 : index
    %1 = vector.load %arg2[%c0_1, %c0_2] : memref<128x128xf32, #tpu.memory_space<vmem>>, vector<128x128xf32>
    %cst = arith.constant dense<0.000000e+00> : vector<4x128xf32>
    %2 = tpu.matmul %0, %1, %cst {dimension_numbers = #tpu.dot_dimension_numbers<[1], [0], [0], [1], [0, 0, 1, 1], [], []>} : vector<4x128xf32>, vector<128x128xf32>, vector<4x128xf32> -> vector<4x128xf32>
    %cst_3 = arith.constant 3.125000e-02 : f32
    %3 = vector.broadcast %cst_3 : f32 to vector<4x128xf32>
    %4 = arith.mulf %2, %3 : vector<4x128xf32>
    %5 = arith.subf %0, %4 : vector<4x128xf32>
    %6 = arith.mulf %5, %5 : vector<4x128xf32>
    %cst_4 = arith.constant dense<0.000000e+00> : vector<4x128xf32>
    %7 = tpu.matmul %6, %1, %cst_4 {dimension_numbers = #tpu.dot_dimension_numbers<[1], [0], [0], [1], [0, 0, 1, 1], [], []>} : vector<4x128xf32>, vector<128x128xf32>, vector<4x128xf32> -> vector<4x128xf32>
    %cst_5 = arith.constant 0.0322580636 : f32
    %8 = vector.broadcast %cst_5 : f32 to vector<4x128xf32>
    %9 = arith.mulf %7, %8 : vector<4x128xf32>
    %10 = math.sqrt %9 : vector<4x128xf32>
    %c0_6 = arith.constant 0 : index
    %c0_7 = arith.constant 0 : index
    %11 = vector.load %arg3[%c0_6, %c0_7] : memref<1x128xf32, #tpu.memory_space<vmem>>, vector<1x128xf32>
    %12 = vector.broadcast %11 : vector<1x128xf32> to vector<4x128xf32>
    %13 = arith.mulf %12, %5 : vector<4x128xf32>
    %cst_8 = arith.constant 9.99999997E-7 : f32
    %14 = vector.broadcast %cst_8 : f32 to vector<4x128xf32>
    %15 = arith.addf %10, %14 : vector<4x128xf32>
    %16 = arith.divf %13, %15 : vector<4x128xf32>
    %c0_9 = arith.constant 0 : index
    %c0_10 = arith.constant 0 : index
    %17 = vector.load %arg4[%c0_9, %c0_10] : memref<1x128xf32, #tpu.memory_space<vmem>>, vector<1x128xf32>
    %18 = vector.broadcast %17 : vector<1x128xf32> to vector<4x128xf32>
    %19 = arith.addf %16, %18 : vector<4x128xf32>
    %c0_11 = arith.constant 0 : index
    %c0_12 = arith.constant 0 : index
    %20 = vector.load %arg5[%c0_11, %c0_12] : memref<4x128xf32, #tpu.memory_space<vmem>>, vector<4x128xf32>
    tpu.vector_store %arg5[%c0_11, %c0_12], %19 {strides = array<i32>} : memref<4x128xf32, #tpu.memory_space<vmem>>, vector<4x128xf32>,
    return
  }
  func.func @transform_0(%arg0: i32) -> (i32, i32) {
    %c0_i32 = arith.constant 0 : i32
    %c0_i32_0 = arith.constant 0 : i32
    return %arg0, %c0_i32 : i32, i32
  }
  func.func @transform_1(%arg0: i32) -> (i32, i32) {
    %c0_i32 = arith.constant 0 : i32
    %c0_i32_0 = arith.constant 0 : i32
    %c0_i32_1 = arith.constant 0 : i32
    return %c0_i32, %c0_i32_0 : i32, i32
  }
  func.func @transform_2(%arg0: i32) -> (i32, i32) {
    %c0_i32 = arith.constant 0 : i32
    %c0_i32_0 = arith.constant 0 : i32
    %c0_i32_1 = arith.constant 0 : i32
    return %c0_i32, %c0_i32_0 : i32, i32
  }
  func.func @transform_3(%arg0: i32) -> (i32, i32) {
    %c0_i32 = arith.constant 0 : i32
    %c0_i32_0 = arith.constant 0 : i32
    %c0_i32_1 = arith.constant 0 : i32
    return %c0_i32, %c0_i32_0 : i32, i32
  }
  func.func @transform_4(%arg0: i32) -> (i32, i32) {
    %c0_i32 = arith.constant 0 : i32
    %c0_i32_0 = arith.constant 0 : i32
    return %arg0, %c0_i32 : i32, i32
  }
}

</mosaic_0001>

<llo_original>
// kernel: tpu_custom_call.1
$region0: #{tpu_custom_call.1}
  #allocation0 [shape = 'u32[]', space=smem, size = 0x4, offset = 0x4, fixed_abs, tag = 'smem constant byte address 0x4 - core index']
  #allocation1 [shape = 'u32[72,128]{1,0:T(1,128)}', space=vmem, size = 0x9000, scoped, tag = 'internal scratch']
  %s0 = inlined_call_operand.hbm [shape: f32[4,128], index: 0, kind: input, shape index: {}]
  %s1 = inlined_call_operand.hbm [shape: f32[128,128], index: 1, kind: input, shape index: {}]
  %s2 = inlined_call_operand.vmem [shape: f32[1,128], index: 2, kind: input, shape index: {}]
  %s3 = inlined_call_operand.vmem [shape: f32[1,128], index: 3, kind: input, shape index: {}]
  %s4 = inlined_call_operand.hbm [shape: f32[4,128], index: 4, kind: output, shape index: {}]
  %s5 = sld [smem:[#allocation0]]
  $region34: #{tpu_custom_call.1} parent=0
    _
  %s7 = ssub.s32 1, %s5
  %s8 = scalar_select 0, %s7, %s5
  $region1: #{tpu_custom_call.1} parent=0
    #allocation2 [shape = 'u8[2048]{0}', space=vmem, size = 0x800, scoped, tag = 'input window, operand 0, single buffered']
    #allocation3 [shape = 's32[1]{0}', space=sflag, size = 0x4, scoped, tag = 'scoped memory for tpu_custom_call.1']
    #allocation4 [shape = 's32[1]{0}', space=sflag, size = 0x4, scoped, tag = 'scoped memory for tpu_custom_call.1']
    #allocation5 [shape = 'u8[65536]{0}', space=vmem, size = 0x10000, scoped, tag = 'input window, operand 1, single buffered']
    #allocation6 [shape = 's32[1]{0}', space=sflag, size = 0x4, scoped, tag = 'scoped memory for tpu_custom_call.1']
    #allocation7 [shape = 'u8[2048]{0}', space=vmem, size = 0x800, scoped, tag = 'output window, operand 0, single buffered']
    %9 = vsyncpa [#allocation3], 0
    %10 = vsyncpa [#allocation6], 0
    %11 = vsyncpa [#allocation4], 0
    // Predicated region
    $region2: #{tpu_custom_call.1} parent=1 // pred_check
      _
    $region3: #{tpu_custom_call.1} parent=1 // pred_check_branch
      %13 = sbr.rel (0) target = $region5
    $region4: #{tpu_custom_call.1} parent=1 // pred_region
      %15 = vsyncadd [#allocation3], 0
      %s17 = sshll.u32 %s0, 4
      %s18 = int_to_ptr.hbm [resolvable:$true] %s17
      %s19 = sshll.u32 [#allocation2], 4
      %s20 = int_to_ptr.vmem [resolvable:$true] %s19
      %22 = dma.hbm_to_vmem [thread:$0]  %s18, 64, %s20, [#allocation3]
    $region5: #{tpu_custom_call.1} parent=1 // pred_fallthru
      _
    // Predicated region
    $region6: #{tpu_custom_call.1} parent=1 // pred_check
      _
    $region7: #{tpu_custom_call.1} parent=1 // pred_check_branch
      %24 = sbr.rel (0) target = $region9
    $region8: #{tpu_custom_call.1} parent=1 // pred_region
      %26 = vsyncadd [#allocation6], 0
      %s27 = sshll.u32 %s1, 4
      %s28 = int_to_ptr.hbm [resolvable:$true] %s27
      %s29 = sshll.u32 [#allocation5], 4
      %s30 = int_to_ptr.vmem [resolvable:$true] %s29
      %35 = dma.hbm_to_vmem [thread:$0]  %s28, 2048, %s30, [#allocation6], 128, 128, 8
    $region9: #{tpu_custom_call.1} parent=1 // pred_fallthru
      _
    // Predicated region
    $region10: #{tpu_custom_call.1} parent=1 // pred_check
      _
    $region11: #{tpu_custom_call.1} parent=1 // pred_check_branch
      %37 = sbr.rel (0) target = $region13
    $region12: #{tpu_custom_call.1} parent=1 // pred_region
      _
    $region13: #{tpu_custom_call.1} parent=1 // pred_fallthru
      _
    // Predicated region
    $region14: #{tpu_custom_call.1} parent=1 // pred_check
      _
    $region15: #{tpu_custom_call.1} parent=1 // pred_check_branch
      %39 = sbr.rel (0) target = $region17
    $region16: #{tpu_custom_call.1} parent=1 // pred_region
      _
    $region17: #{tpu_custom_call.1} parent=1 // pred_fallthru
      _
    // Predicated region
    $region18: #{tpu_custom_call.1} parent=1 // pred_check
      _
    $region19: #{tpu_custom_call.1} parent=1 // pred_check_branch
      %41 = sbr.rel (0) target = $region21
    $region20: #{tpu_custom_call.1} parent=1 // pred_region
      %43 = dma.done [#allocation3], 64
    $region21: #{tpu_custom_call.1} parent=1 // pred_fallthru
      _
    // Predicated region
    $region22: #{tpu_custom_call.1} parent=1 // pred_check
      _
    $region23: #{tpu_custom_call.1} parent=1 // pred_check_branch
      %45 = sbr.rel (0) target = $region25
    $region24: #{tpu_custom_call.1} parent=1 // pred_region
      %47 = dma.done [#allocation6], 2048
    $region25: #{tpu_custom_call.1} parent=1 // pred_fallthru
      _
    %v48 = vld [vmem:[#allocation2] sm:$0xf]
    %v49 = vld [vmem:[#allocation5] sm:$0xff]
    %v50 = vld [vmem:[#allocation5 + $0x8] sm:$0xff]
    %v51 = vld [vmem:[#allocation5 + $0x10] sm:$0xff]
    %v52 = vld [vmem:[#allocation5 + $0x18] sm:$0xff]
    %v53 = vld [vmem:[#allocation5 + $0x20] sm:$0xff]
    %v54 = vld [vmem:[#allocation5 + $0x28] sm:$0xff]
    %v55 = vld [vmem:[#allocation5 + $0x30] sm:$0xff]
    %v56 = vld [vmem:[#allocation5 + $0x38] sm:$0xff]
    %v57 = vld [vmem:[#allocation5 + $0x40] sm:$0xff]
    %v58 = vld [vmem:[#allocation5 + $0x48] sm:$0xff]
    %v59 = vld [vmem:[#allocation5 + $0x50] sm:$0xff]
    %v60 = vld [vmem:[#allocation5 + $0x58] sm:$0xff]
    %v61 = vld [vmem:[#allocation5 + $0x60] sm:$0xff]
    %v62 = vld [vmem:[#allocation5 + $0x68] sm:$0xff]
    %v63 = vld [vmem:[#allocation5 + $0x70] sm:$0xff]
    %v64 = vld [vmem:[#allocation5 + $0x78] sm:$0xff]
    %65 = vmatpush.msra.mxu0 %v64
    %66 = vmatpush.msra.mxu0 %v63
    %67 = vmatpush.msra.mxu0 %v62
    %68 = vmatpush.msra.mxu0 %v61
    %69 = vmatpush.msra.mxu0 %v60
    %70 = vmatpush.msra.mxu0 %v59
    %71 = vmatpush.msra.mxu0 %v58
    %72 = vmatpush.msra.mxu0 %v57
    %73 = vmatpush.msra.mxu0 %v56
    %74 = vmatpush.msra.mxu0 %v55
    %75 = vmatpush.msra.mxu0 %v54
    %76 = vmatpush.msra.mxu0 %v53
    %77 = vmatpush.msra.mxu0 %v52
    %78 = vmatpush.msra.mxu0 %v51
    %79 = vmatpush.msra.mxu0 %v50
    %80 = vmatpush.msra.mxu0 %v49
    %81 = vmatmul.f32.gmra.mxu0 %v48
    %v82 = vpop.f32.mrf.mxu0
    %v83 = vadd.f32 0.0, %v82
    %84 = vdwg.mxu0
    %v85 = vmul.f32 %v83, 0.03125
    %v86 = vsub.f32 %v48, %v85
    %v87 = vmul.f32 %v86, %v86
    %88 = vmatpush.msra.mxu0 %v64
    %89 = vmatpush.msra.mxu0 %v63
    %90 = vmatpush.msra.mxu0 %v62
    %91 = vmatpush.msra.mxu0 %v61
    %92 = vmatpush.msra.mxu0 %v60
    %93 = vmatpush.msra.mxu0 %v59
    %94 = vmatpush.msra.mxu0 %v58
    %95 = vmatpush.msra.mxu0 %v57
    %96 = vmatpush.msra.mxu0 %v56
    %97 = vmatpush.msra.mxu0 %v55
    %98 = vmatpush.msra.mxu0 %v54
    %99 = vmatpush.msra.mxu0 %v53
    %100 = vmatpush.msra.mxu0 %v52
    %101 = vmatpush.msra.mxu0 %v51
    %102 = vmatpush.msra.mxu0 %v50
    %103 = vmatpush.msra.mxu0 %v49
    %104 = vmatmul.f32.gmra.mxu0 %v87
    %v105 = vpop.f32.mrf.mxu0
    %v106 = vadd.f32 0.0, %v105
    %107 = vdwg.mxu0
    %v108 = vmul.f32 %v106, 0.032258064
    %v109 = vrsqrt.pop %v108
    %v110 = vmul.f32 %v109, %v108
    %v111 = vmul.f32 %v110, %v109
    %v112 = vmul.f32 0.5, %v111
    %v113 = vsub.f32 1.5, %v112
    %v114 = vmul.f32 %v109, %v113
    %v115 = vmul.f32 %v108, %v114
    %vm116 = vcmp.eq.f32.partialorder %v108, inf
    %v117 = vsel %vm116, %v108, %v115
    %vm118 = vcmp.eq.f32.partialorder %v108, 0.0
    %v119 = vand.u32 %v108, 2147483648
    %v120 = vsel %vm118, %v119, %v117
    %v121 = vld [vmem:[%s2] sm:$0x1]
    %v123 = vperm.slane %v121, 0
    %v125 = vmul.f32 %v123, %v86
    %v126 = vadd.f32 %v120, 1e-06
    %v127 = vrcp.pop %v126
    %v128 = vmul.f32 %v126, %v127
    %v129 = vsub.f32 1.0, %v128
    %v130 = vmul.f32 %v127, %v129
    %v131 = vadd.f32 %v127, %v130
    %vm132 = vweird.f32 %v126
    %vm133 = vweird.f32 %v127
    %vm134 = vmor %vm132, %vm133
    %v135 = vsel %vm134, %v127, %v131
    %v136 = vand.u32 2147483647, %v126
    %vm137 = vcmp.eq.f32.partialorder %v136, 8.507059e+37
    %v138 = vand.u32 %v126, 2147483648
    %v139 = vor.u32 1.1754944e-38, %v138
    %v140 = vsel %vm137, %v139, %v135
    %v141 = vmul.f32 %v125, %v140
    %v142 = vld [vmem:[%s3] sm:$0x1]
    %v144 = vperm.slane %v142, 0
    %v146 = vadd.f32 %v141, %v144
    %147 = vst [vmem:[#allocation7] sm:$0xf] %v146
    // Predicated region
    $region26: #{tpu_custom_call.1} parent=1 // pred_check
      _
    $region27: #{tpu_custom_call.1} parent=1 // pred_check_branch
      %149 = sbr.rel (0) target = $region29
    $region28: #{tpu_custom_call.1} parent=1 // pred_region
      %151 = vsyncadd [#allocation4], 0
      %s153 = sshll.u32 [#allocation7], 4
      %s154 = int_to_ptr.vmem [resolvable:$true] %s153
      %s155 = sshll.u32 %s4, 4
      %s156 = int_to_ptr.hbm [resolvable:$true] %s155
      %158 = dma.vmem_to_hbm [thread:$0]  %s154, 64, %s156, [#allocation4]
    $region29: #{tpu_custom_call.1} parent=1 // pred_fallthru
      _
    // Predicated region
    $region30: #{tpu_custom_call.1} parent=1 // pred_check
      _
    $region31: #{tpu_custom_call.1} parent=1 // pred_check_branch
      %160 = sbr.rel (0) target = $region33
    $region32: #{tpu_custom_call.1} parent=1 // pred_region
      %162 = dma.done [#allocation4], 64
    $region33: #{tpu_custom_call.1} parent=1 // pred_fallthru
      _
    %163 = vsyncpa [#allocation3], 1
    %164 = vsyncpa [#allocation6], 1
    %165 = vsyncpa [#allocation4], 1

</llo_original>
